<compile_context>
chip_gen: v7x
topology: tpu7x:2x2x1
jax: 0.10.0
libtpu: 0.0.40
codegen_flags: <defaults>
</compile_context>

<pallas_src>
import math
import functools

import numpy as np
import jax
import jax.numpy as jnp
from jax import lax
from jax.experimental import pallas as pl
from jax.experimental.pallas import tpu as pltpu


def _gaussian_taps_1d(kernel_size, sigma, dim=2):
    """Per-axis 1D taps whose outer product equals the torch 2D buffer (normalized)."""
    ks = [kernel_size] * dim if isinstance(kernel_size, (int, float)) else list(kernel_size)
    sg = [sigma] * dim if isinstance(sigma, (int, float)) else list(sigma)
    taps = []
    for size, std in zip(ks, sg):
        mean = (size - 1) / 2.0
        g = (1.0 / (std * math.sqrt(2.0 * math.pi))) * np.exp(
            -(((np.arange(size, dtype=np.float64) - mean) / std) ** 2) / 2.0)
        taps.append(g / g.sum())
    return taps  # outer(taps[0], taps[1]) == normalized torch 2D kernel


def _gaussian_kernel2d(kernel_size, sigma):
    tv, th = _gaussian_taps_1d(kernel_size, sigma, dim=2)
    return np.asarray(np.outer(tv, th), dtype=np.float32)


def _smooth_kernel(x_ref, o_ref, *, K, taps_v, taps_h, row_strip):
    # x_ref: (Hp, Wp, TC)  already zero-padded block, lane axis = channels (TC % 128 == 0)
    # o_ref: (H_out, W_out, TC)
    H_out, W_out, _ = o_ref.shape
    for r0 in range(0, H_out, row_strip):
        rows = min(row_strip, H_out - r0)
        # Vertical (H) pass -> per-strip f32 temp over the full padded width.
        tmp = taps_v[0] * x_ref[r0:r0 + rows, :, :].astype(jnp.float32)
        for dh in range(1, K):
            tmp = tmp + taps_v[dh] * x_ref[r0 + dh:r0 + dh + rows, :, :].astype(jnp.float32)
        # Horizontal (W) pass -> output strip.
        acc = taps_h[0] * tmp[:, 0:W_out, :]
        for dw in range(1, K):
            acc = acc + taps_h[dw] * tmp[:, dw:dw + W_out, :]
        o_ref[r0:r0 + rows, :, :] = acc.astype(o_ref.dtype)


def gaussian_smoothing(x, channels, kernel_size=3, sigma=1.0, target_block_bytes=8 << 20):
    """Pallas equivalent of GaussianSmoothing(channels, kernel_size, sigma, dim=2)(x), NCHW.

    Note: like the torch forward(), padding=1 is hardcoded, so the output is only 'same'-shaped
    for kernel_size == 3.
    """
    N, C, H, W = x.shape
    assert C == channels
    K = int(kernel_size)
    pad = 1
    Hp, Wp = H + 2 * pad, W + 2 * pad
    H_out, W_out = Hp - K + 1, Wp - K + 1

    # Compile-time separable Gaussian taps (kernel_size/sigma are static) -> Python floats.
    tv, th = _gaussian_taps_1d(K, sigma, dim=2)
    taps_v = tuple(float(v) for v in tv)
    taps_h = tuple(float(v) for v in th)

    NC = N * C
    LANE = 128
    nc_pad128 = -(-NC // LANE) * LANE
    itemsize = jnp.dtype(x.dtype).itemsize

    # Channel-block sizing: per-channel VMEM of one grid step (double-buffered input + output).
    bytes_per_chan = itemsize * 2 * (Hp * Wp + H_out * W_out)
    tc = (target_block_bytes // bytes_per_chan) // LANE * LANE
    floor = 512 if nc_pad128 >= 512 else LANE          # long DMA segments on HBM-bound v5e/v6e
    TC = int(min(max(tc, floor), nc_pad128))
    if nc_pad128 >= 2 * LANE:                          # keep >=2 grid steps -> both v7x TCs busy
        TC = int(min(TC, max(LANE, (nc_pad128 // 2) // LANE * LANE)))
    NC_pad = -(-NC // TC) * TC

    # Single fused pad (spatial halo + channel lane-padding), then one transpose to channels-last.
    # TODO(synk): accept/emit channels-last at the API boundary to drop the two HBM transposes.
    x_p = jnp.pad(x.reshape(NC, H, W), ((0, NC_pad - NC), (pad, pad), (pad, pad)))
    x_cl = jnp.transpose(x_p, (1, 2, 0))               # (Hp, Wp, NC_pad)

    # Strip length bounding the live f32 temp + accumulator to ~32 vregs.
    row_strip = max(1, min(H_out, (32 * 1024) // max(1, (Wp + W_out) * TC)))

    # VMEM budget per generation (128 MiB on v5e/v6e, 64 MiB per TC on v7x).
    try:
        vmem_cap = int(pltpu.get_tpu_info().vmem_capacity_bytes)
    except Exception:
        vmem_cap = 64 * 1024 * 1024
    vmem_limit = int(min(64 << 20, (vmem_cap * 5) // 8))

    kernel = functools.partial(_smooth_kernel, K=K, taps_v=taps_v, taps_h=taps_h,
                               row_strip=row_strip)

    # TODO(synk): for very large H*W add spatial (H) tiling with a 1-row halo via manual DMA
    # (memory_space=pl.ANY); this version keeps the whole padded plane of a channel block in VMEM.
    out_cl = pl.pallas_call(
        kernel,
        out_shape=jax.ShapeDtypeStruct((H_out, W_out, NC_pad), x.dtype),
        grid=(NC_pad // TC,),
        in_specs=[pl.BlockSpec((Hp, Wp, TC), lambda i: (0, 0, i))],
        out_specs=pl.BlockSpec((H_out, W_out, TC), lambda i: (0, 0, i)),
        compiler_params=pltpu.CompilerParams(
            dimension_semantics=("parallel",),
            vmem_limit_bytes=vmem_limit,
        ),
    )(x_cl)

    # Back to NCHW; drop the lane-padding channels.
    out = jnp.transpose(out_cl[:, :, :NC], (2, 0, 1)).reshape(N, C, H_out, W_out)
    return out


if __name__ == "__main__":
    key = jax.random.PRNGKey(0)
    N, C, H, W = 2, 4, 16, 16
    kernel_size, sigma = 3, 1.0

    x = jax.random.normal(key, (N, C, H, W), dtype=jnp.float32)

    y = gaussian_smoothing(x, channels=C, kernel_size=kernel_size, sigma=sigma)
    y = jax.block_until_ready(y)
    assert y.shape == (N, C, H, W), y.shape

    # Reference: grouped (depthwise) conv with the same Gaussian weight, padding=1.
    w2d = jnp.asarray(_gaussian_kernel2d(kernel_size, sigma))
    w_ref = jnp.tile(w2d[None, None], (C, 1, 1, 1))  # (C, 1, K, K) like the torch buffer
    y_ref = lax.conv_general_dilated(
        x, w_ref, window_strides=(1, 1), padding=((1, 1), (1, 1)),
        dimension_numbers=("NCHW", "OIHW", "NCHW"), feature_group_count=C,
        precision=lax.Precision.HIGHEST,
    )
    assert jnp.allclose(y, y_ref, atol=1e-5, rtol=1e-5), float(jnp.max(jnp.abs(y - y_ref)))

    print("KERNEL_OK")
</pallas_src>

<mosaic_0001>
module attributes {stable_mosaic.version = 11 : i64} {
  func.func @_smooth_kernel(%arg0: i32, %arg1: memref<18x18x128xf32, #tpu.memory_space<vmem>>, %arg2: memref<16x16x128xf32, #tpu.memory_space<vmem>>) attributes {dimension_semantics = [#tpu.dimension_semantics<parallel>], iteration_bounds = array<i64: 1>, scalar_prefetch = 0 : i64, scratch_operands = 0 : i64, tpu.core_type = #tpu.core_type<tc>, window_params = [{transform_indices = @transform_0, window_bounds = array<i64: 18, 18, 128>}, {transform_indices = @transform_1, window_bounds = array<i64: 16, 16, 128>}]} {
    %c0 = arith.constant 0 : index
    %c0_0 = arith.constant 0 : index
    %c0_1 = arith.constant 0 : index
    %0 = vector.load %arg1[%c0, %c0_0, %c0_1] : memref<18x18x128xf32, #tpu.memory_space<vmem>>, vector<7x18x128xf32>
    %cst = arith.constant 0.274068624 : f32
    %1 = vector.broadcast %cst : f32 to vector<7x18x128xf32>
    %2 = arith.mulf %1, %0 : vector<7x18x128xf32>
    %c1 = arith.constant 1 : index
    %c0_2 = arith.constant 0 : index
    %c0_3 = arith.constant 0 : index
    %3 = vector.load %arg1[%c1, %c0_2, %c0_3] : memref<18x18x128xf32, #tpu.memory_space<vmem>>, vector<7x18x128xf32>
    %cst_4 = arith.constant 0.451862752 : f32
    %4 = vector.broadcast %cst_4 : f32 to vector<7x18x128xf32>
    %5 = arith.mulf %4, %3 : vector<7x18x128xf32>
    %6 = arith.addf %2, %5 : vector<7x18x128xf32>
    %c2 = arith.constant 2 : index
    %c0_5 = arith.constant 0 : index
    %c0_6 = arith.constant 0 : index
    %7 = vector.load %arg1[%c2, %c0_5, %c0_6] : memref<18x18x128xf32, #tpu.memory_space<vmem>>, vector<7x18x128xf32>
    %cst_7 = arith.constant 0.274068624 : f32
    %8 = vector.broadcast %cst_7 : f32 to vector<7x18x128xf32>
    %9 = arith.mulf %8, %7 : vector<7x18x128xf32>
    %10 = arith.addf %6, %9 : vector<7x18x128xf32>
    %11 = vector.extract_strided_slice %10 {offsets = [0, 0, 0], sizes = [7, 16, 128], strides = [1, 1, 1]} : vector<7x18x128xf32> to vector<7x16x128xf32>
    %cst_8 = arith.constant 0.274068624 : f32
    %12 = vector.broadcast %cst_8 : f32 to vector<7x16x128xf32>
    %13 = arith.mulf %12, %11 : vector<7x16x128xf32>
    %14 = vector.extract_strided_slice %10 {offsets = [0, 1, 0], sizes = [7, 16, 128], strides = [1, 1, 1]} : vector<7x18x128xf32> to vector<7x16x128xf32>
    %cst_9 = arith.constant 0.451862752 : f32
    %15 = vector.broadcast %cst_9 : f32 to vector<7x16x128xf32>
    %16 = arith.mulf %15, %14 : vector<7x16x128xf32>
    %17 = arith.addf %13, %16 : vector<7x16x128xf32>
    %18 = vector.extract_strided_slice %10 {offsets = [0, 2, 0], sizes = [7, 16, 128], strides = [1, 1, 1]} : vector<7x18x128xf32> to vector<7x16x128xf32>
    %cst_10 = arith.constant 0.274068624 : f32
    %19 = vector.broadcast %cst_10 : f32 to vector<7x16x128xf32>
    %20 = arith.mulf %19, %18 : vector<7x16x128xf32>
    %21 = arith.addf %17, %20 : vector<7x16x128xf32>
    %c0_11 = arith.constant 0 : index
    %c0_12 = arith.constant 0 : index
    %c0_13 = arith.constant 0 : index
    %22 = vector.load %arg2[%c0_11, %c0_12, %c0_13] : memref<16x16x128xf32, #tpu.memory_space<vmem>>, vector<7x16x128xf32>
    tpu.vector_store %arg2[%c0_11, %c0_12, %c0_13], %21 {strides = array<i32>} : memref<16x16x128xf32, #tpu.memory_space<vmem>>, vector<7x16x128xf32>,
    %c7 = arith.constant 7 : index
    %c0_14 = arith.constant 0 : index
    %c0_15 = arith.constant 0 : index
    %23 = vector.load %arg1[%c7, %c0_14, %c0_15] : memref<18x18x128xf32, #tpu.memory_space<vmem>>, vector<7x18x128xf32>
    %cst_16 = arith.constant 0.274068624 : f32
    %24 = vector.broadcast %cst_16 : f32 to vector<7x18x128xf32>
    %25 = arith.mulf %24, %23 : vector<7x18x128xf32>
    %c8 = arith.constant 8 : index
    %c0_17 = arith.constant 0 : index
    %c0_18 = arith.constant 0 : index
    %26 = vector.load %arg1[%c8, %c0_17, %c0_18] : memref<18x18x128xf32, #tpu.memory_space<vmem>>, vector<7x18x128xf32>
    %cst_19 = arith.constant 0.451862752 : f32
    %27 = vector.broadcast %cst_19 : f32 to vector<7x18x128xf32>
    %28 = arith.mulf %27, %26 : vector<7x18x128xf32>
    %29 = arith.addf %25, %28 : vector<7x18x128xf32>
    %c9 = arith.constant 9 : index
    %c0_20 = arith.constant 0 : index
    %c0_21 = arith.constant 0 : index
    %30 = vector.load %arg1[%c9, %c0_20, %c0_21] : memref<18x18x128xf32, #tpu.memory_space<vmem>>, vector<7x18x128xf32>
    %cst_22 = arith.constant 0.274068624 : f32
    %31 = vector.broadcast %cst_22 : f32 to vector<7x18x128xf32>
    %32 = arith.mulf %31, %30 : vector<7x18x128xf32>
    %33 = arith.addf %29, %32 : vector<7x18x128xf32>
    %34 = vector.extract_strided_slice %33 {offsets = [0, 0, 0], sizes = [7, 16, 128], strides = [1, 1, 1]} : vector<7x18x128xf32> to vector<7x16x128xf32>
    %cst_23 = arith.constant 0.274068624 : f32
    %35 = vector.broadcast %cst_23 : f32 to vector<7x16x128xf32>
    %36 = arith.mulf %35, %34 : vector<7x16x128xf32>
    %37 = vector.extract_strided_slice %33 {offsets = [0, 1, 0], sizes = [7, 16, 128], strides = [1, 1, 1]} : vector<7x18x128xf32> to vector<7x16x128xf32>
    %cst_24 = arith.constant 0.451862752 : f32
    %38 = vector.broadcast %cst_24 : f32 to vector<7x16x128xf32>
    %39 = arith.mulf %38, %37 : vector<7x16x128xf32>
    %40 = arith.addf %36, %39 : vector<7x16x128xf32>
    %41 = vector.extract_strided_slice %33 {offsets = [0, 2, 0], sizes = [7, 16, 128], strides = [1, 1, 1]} : vector<7x18x128xf32> to vector<7x16x128xf32>
    %cst_25 = arith.constant 0.274068624 : f32
    %42 = vector.broadcast %cst_25 : f32 to vector<7x16x128xf32>
    %43 = arith.mulf %42, %41 : vector<7x16x128xf32>
    %44 = arith.addf %40, %43 : vector<7x16x128xf32>
    %c7_26 = arith.constant 7 : index
    %c0_27 = arith.constant 0 : index
    %c0_28 = arith.constant 0 : index
    %45 = vector.load %arg2[%c7_26, %c0_27, %c0_28] : memref<16x16x128xf32, #tpu.memory_space<vmem>>, vector<7x16x128xf32>
    tpu.vector_store %arg2[%c7_26, %c0_27, %c0_28], %44 {strides = array<i32>} : memref<16x16x128xf32, #tpu.memory_space<vmem>>, vector<7x16x128xf32>,
    %c14 = arith.constant 14 : index
    %c0_29 = arith.constant 0 : index
    %c0_30 = arith.constant 0 : index
    %46 = vector.load %arg1[%c14, %c0_29, %c0_30] : memref<18x18x128xf32, #tpu.memory_space<vmem>>, vector<2x18x128xf32>
    %cst_31 = arith.constant 0.274068624 : f32
    %47 = vector.broadcast %cst_31 : f32 to vector<2x18x128xf32>
    %48 = arith.mulf %47, %46 : vector<2x18x128xf32>
    %c15 = arith.constant 15 : index
    %c0_32 = arith.constant 0 : index
    %c0_33 = arith.constant 0 : index
    %49 = vector.load %arg1[%c15, %c0_32, %c0_33] : memref<18x18x128xf32, #tpu.memory_space<vmem>>, vector<2x18x128xf32>
    %cst_34 = arith.constant 0.451862752 : f32
    %50 = vector.broadcast %cst_34 : f32 to vector<2x18x128xf32>
    %51 = arith.mulf %50, %49 : vector<2x18x128xf32>
    %52 = arith.addf %48, %51 : vector<2x18x128xf32>
    %c16 = arith.constant 16 : index
    %c0_35 = arith.constant 0 : index
    %c0_36 = arith.constant 0 : index
    %53 = vector.load %arg1[%c16, %c0_35, %c0_36] : memref<18x18x128xf32, #tpu.memory_space<vmem>>, vector<2x18x128xf32>
    %cst_37 = arith.constant 0.274068624 : f32
    %54 = vector.broadcast %cst_37 : f32 to vector<2x18x128xf32>
    %55 = arith.mulf %54, %53 : vector<2x18x128xf32>
    %56 = arith.addf %52, %55 : vector<2x18x128xf32>
    %57 = vector.extract_strided_slice %56 {offsets = [0, 0, 0], sizes = [2, 16, 128], strides = [1, 1, 1]} : vector<2x18x128xf32> to vector<2x16x128xf32>
    %cst_38 = arith.constant 0.274068624 : f32
    %58 = vector.broadcast %cst_38 : f32 to vector<2x16x128xf32>
    %59 = arith.mulf %58, %57 : vector<2x16x128xf32>
    %60 = vector.extract_strided_slice %56 {offsets = [0, 1, 0], sizes = [2, 16, 128], strides = [1, 1, 1]} : vector<2x18x128xf32> to vector<2x16x128xf32>
    %cst_39 = arith.constant 0.451862752 : f32
    %61 = vector.broadcast %cst_39 : f32 to vector<2x16x128xf32>
    %62 = arith.mulf %61, %60 : vector<2x16x128xf32>
    %63 = arith.addf %59, %62 : vector<2x16x128xf32>
    %64 = vector.extract_strided_slice %56 {offsets = [0, 2, 0], sizes = [2, 16, 128], strides = [1, 1, 1]} : vector<2x18x128xf32> to vector<2x16x128xf32>
    %cst_40 = arith.constant 0.274068624 : f32
    %65 = vector.broadcast %cst_40 : f32 to vector<2x16x128xf32>
    %66 = arith.mulf %65, %64 : vector<2x16x128xf32>
    %67 = arith.addf %63, %66 : vector<2x16x128xf32>
    %c14_41 = arith.constant 14 : index
    %c0_42 = arith.constant 0 : index
    %c0_43 = arith.constant 0 : index
    %68 = vector.load %arg2[%c14_41, %c0_42, %c0_43] : memref<16x16x128xf32, #tpu.memory_space<vmem>>, vector<2x16x128xf32>
    tpu.vector_store %arg2[%c14_41, %c0_42, %c0_43], %67 {strides = array<i32>} : memref<16x16x128xf32, #tpu.memory_space<vmem>>, vector<2x16x128xf32>,
    return
  }
  func.func @transform_0(%arg0: i32) -> (i32, i32, i32) {
    %c0_i32 = arith.constant 0 : i32
    %c0_i32_0 = arith.constant 0 : i32
    %c0_i32_1 = arith.constant 0 : i32
    return %c0_i32, %c0_i32_0, %arg0 : i32, i32, i32
  }
  func.func @transform_1(%arg0: i32) -> (i32, i32, i32) {
    %c0_i32 = arith.constant 0 : i32
    %c0_i32_0 = arith.constant 0 : i32
    %c0_i32_1 = arith.constant 0 : i32
    return %c0_i32, %c0_i32_0, %arg0 : i32, i32, i32
  }
}

</mosaic_0001>

<llo_original>
// kernel: tpu_custom_call.1
$region0: #{tpu_custom_call.1}
  #allocation0 [shape = 'u32[]', space=smem, size = 0x4, offset = 0x4, fixed_abs, tag = 'smem constant byte address 0x4 - core index']
  #allocation1 [shape = 'u32[144,128]{1,0:T(1,128)}', space=vmem, size = 0x12000, scoped, tag = 'internal scratch']
  %s0 = inlined_call_operand.hbm [shape: f32[18,18,128], index: 0, kind: input, shape index: {}]
  %s1 = inlined_call_operand.hbm [shape: f32[16,16,128], index: 1, kind: output, shape index: {}]
  %s2 = sld [smem:[#allocation0]]
  $region18: #{tpu_custom_call.1} parent=0
    _
  %s4 = ssub.s32 1, %s2
  %s5 = scalar_select 0, %s4, %s2
  $region1: #{tpu_custom_call.1} parent=0
    #allocation2 [shape = 'u8[221184]{0}', space=vmem, size = 0x36000, scoped, tag = 'input window, operand 0, single buffered']
    #allocation3 [shape = 's32[1]{0}', space=sflag, size = 0x4, scoped, tag = 'scoped memory for tpu_custom_call.1']
    #allocation4 [shape = 's32[1]{0}', space=sflag, size = 0x4, scoped, tag = 'scoped memory for tpu_custom_call.1']
    #allocation5 [shape = 'u8[131072]{0}', space=vmem, size = 0x20000, scoped, tag = 'output window, operand 0, single buffered']
    %6 = vsyncpa [#allocation3], 0
    %7 = vsyncpa [#allocation4], 0
    // Predicated region
    $region2: #{tpu_custom_call.1} parent=1 // pred_check
      _
    $region3: #{tpu_custom_call.1} parent=1 // pred_check_branch
      %9 = sbr.rel (0) target = $region5
    $region4: #{tpu_custom_call.1} parent=1 // pred_region
      %s11 = ssub.s32 6912, 6912
      %12 = vsyncadd [#allocation3], %s11
      %s13 = sshll.u32 [#allocation2], 4
      %s14 = int_to_ptr.vmem [resolvable:$true] %s13
      %19 = dma.hbm_to_vmem [thread:$0]  %s0, 6912, %s14, [#allocation3], 128, 128, 8
    $region5: #{tpu_custom_call.1} parent=1 // pred_fallthru
      _
    // Predicated region
    $region6: #{tpu_custom_call.1} parent=1 // pred_check
      _
    $region7: #{tpu_custom_call.1} parent=1 // pred_check_branch
      %21 = sbr.rel (0) target = $region9
    $region8: #{tpu_custom_call.1} parent=1 // pred_region
      %22 = dma.done [#allocation3], 6912
    $region9: #{tpu_custom_call.1} parent=1 // pred_fallthru
      _
    %v23 = vld [vmem:[#allocation2] sm:$0xff]
    %v24 = vld [vmem:[#allocation2 + $0x8] sm:$0xff]
    %v25 = vld [vmem:[#allocation2 + $0x10] sm:$0x3]
    %v26 = vld [vmem:[#allocation2 + $0x18] sm:$0xff]
    %v27 = vld [vmem:[#allocation2 + $0x20] sm:$0xff]
    %v28 = vld [vmem:[#allocation2 + $0x28] sm:$0x3]
    %v29 = vld [vmem:[#allocation2 + $0x30] sm:$0xff]
    %v30 = vld [vmem:[#allocation2 + $0x38] sm:$0xff]
    %v31 = vld [vmem:[#allocation2 + $0x40] sm:$0x3]
    %v32 = vld [vmem:[#allocation2 + $0x48] sm:$0xff]
    %v33 = vld [vmem:[#allocation2 + $0x50] sm:$0xff]
    %v34 = vld [vmem:[#allocation2 + $0x58] sm:$0x3]
    %v35 = vld [vmem:[#allocation2 + $0x60] sm:$0xff]
    %v36 = vld [vmem:[#allocation2 + $0x68] sm:$0xff]
    %v37 = vld [vmem:[#allocation2 + $0x70] sm:$0x3]
    %v38 = vld [vmem:[#allocation2 + $0x78] sm:$0xff]
    %v39 = vld [vmem:[#allocation2 + $0x80] sm:$0xff]
    %v40 = vld [vmem:[#allocation2 + $0x88] sm:$0x3]
    %v41 = vld [vmem:[#allocation2 + $0x90] sm:$0xff]
    %v42 = vld [vmem:[#allocation2 + $0x98] sm:$0xff]
    %v43 = vld [vmem:[#allocation2 + $0xa0] sm:$0x3]
    %v44 = vmul.f32 %v23, 0.27406862
    %v45 = vmul.f32 %v24, 0.27406862
    %v46 = vmul.f32 %v25, 0.27406862
    %v47 = vmul.f32 %v26, 0.27406862
    %v48 = vmul.f32 %v27, 0.27406862
    %v49 = vmul.f32 %v28, 0.27406862
    %v50 = vmul.f32 %v29, 0.27406862
    %v51 = vmul.f32 %v30, 0.27406862
    %v52 = vmul.f32 %v31, 0.27406862
    %v53 = vmul.f32 %v32, 0.27406862
    %v54 = vmul.f32 %v33, 0.27406862
    %v55 = vmul.f32 %v34, 0.27406862
    %v56 = vmul.f32 %v35, 0.27406862
    %v57 = vmul.f32 %v36, 0.27406862
    %v58 = vmul.f32 %v37, 0.27406862
    %v59 = vmul.f32 %v38, 0.27406862
    %v60 = vmul.f32 %v39, 0.27406862
    %v61 = vmul.f32 %v40, 0.27406862
    %v62 = vmul.f32 %v41, 0.27406862
    %v63 = vmul.f32 %v42, 0.27406862
    %v64 = vmul.f32 %v43, 0.27406862
    %s65 = scalar_lea.vmem [#allocation2], 24
    %v66 = vld [vmem:[%s65] sm:$0xff]
    %v67 = vld [vmem:[%s65 + $0x8] sm:$0xff]
    %v68 = vld [vmem:[%s65 + $0x10] sm:$0x3]
    %v69 = vld [vmem:[%s65 + $0x18] sm:$0xff]
    %v70 = vld [vmem:[%s65 + $0x20] sm:$0xff]
    %v71 = vld [vmem:[%s65 + $0x28] sm:$0x3]
    %v72 = vld [vmem:[%s65 + $0x30] sm:$0xff]
    %v73 = vld [vmem:[%s65 + $0x38] sm:$0xff]
    %v74 = vld [vmem:[%s65 + $0x40] sm:$0x3]
    %v75 = vld [vmem:[%s65 + $0x48] sm:$0xff]
    %v76 = vld [vmem:[%s65 + $0x50] sm:$0xff]
    %v77 = vld [vmem:[%s65 + $0x58] sm:$0x3]
    %v78 = vld [vmem:[%s65 + $0x60] sm:$0xff]
    %v79 = vld [vmem:[%s65 + $0x68] sm:$0xff]
    %v80 = vld [vmem:[%s65 + $0x70] sm:$0x3]
    %v81 = vld [vmem:[%s65 + $0x78] sm:$0xff]
    %v82 = vld [vmem:[%s65 + $0x80] sm:$0xff]
    %v83 = vld [vmem:[%s65 + $0x88] sm:$0x3]
    %v84 = vld [vmem:[%s65 + $0x90] sm:$0xff]
    %v85 = vld [vmem:[%s65 + $0x98] sm:$0xff]
    %v86 = vld [vmem:[%s65 + $0xa0] sm:$0x3]
    %v87 = vmul.f32 %v66, 0.45186275
    %v88 = vmul.f32 %v67, 0.45186275
    %v89 = vmul.f32 %v68, 0.45186275
    %v90 = vmul.f32 %v69, 0.45186275
    %v91 = vmul.f32 %v70, 0.45186275
    %v92 = vmul.f32 %v71, 0.45186275
    %v93 = vmul.f32 %v72, 0.45186275
    %v94 = vmul.f32 %v73, 0.45186275
    %v95 = vmul.f32 %v74, 0.45186275
    %v96 = vmul.f32 %v75, 0.45186275
    %v97 = vmul.f32 %v76, 0.45186275
    %v98 = vmul.f32 %v77, 0.45186275
    %v99 = vmul.f32 %v78, 0.45186275
    %v100 = vmul.f32 %v79, 0.45186275
    %v101 = vmul.f32 %v80, 0.45186275
    %v102 = vmul.f32 %v81, 0.45186275
    %v103 = vmul.f32 %v82, 0.45186275
    %v104 = vmul.f32 %v83, 0.45186275
    %v105 = vmul.f32 %v84, 0.45186275
    %v106 = vmul.f32 %v85, 0.45186275
    %v107 = vmul.f32 %v86, 0.45186275
    %v108 = vadd.f32 %v44, %v87
    %v109 = vadd.f32 %v45, %v88
    %v110 = vadd.f32 %v46, %v89
    %v111 = vadd.f32 %v47, %v90
    %v112 = vadd.f32 %v48, %v91
    %v113 = vadd.f32 %v49, %v92
    %v114 = vadd.f32 %v50, %v93
    %v115 = vadd.f32 %v51, %v94
    %v116 = vadd.f32 %v52, %v95
    %v117 = vadd.f32 %v53, %v96
    %v118 = vadd.f32 %v54, %v97
    %v119 = vadd.f32 %v55, %v98
    %v120 = vadd.f32 %v56, %v99
    %v121 = vadd.f32 %v57, %v100
    %v122 = vadd.f32 %v58, %v101
    %v123 = vadd.f32 %v59, %v102
    %v124 = vadd.f32 %v60, %v103
    %v125 = vadd.f32 %v61, %v104
    %v126 = vadd.f32 %v62, %v105
    %v127 = vadd.f32 %v63, %v106
    %v128 = vadd.f32 %v64, %v107
    %s129 = scalar_lea.vmem [#allocation2], 48
    %v130 = vld [vmem:[%s129] sm:$0xff]
    %v131 = vld [vmem:[%s129 + $0x8] sm:$0xff]
    %v132 = vld [vmem:[%s129 + $0x10] sm:$0x3]
    %v133 = vld [vmem:[%s129 + $0x18] sm:$0xff]
    %v134 = vld [vmem:[%s129 + $0x20] sm:$0xff]
    %v135 = vld [vmem:[%s129 + $0x28] sm:$0x3]
    %v136 = vld [vmem:[%s129 + $0x30] sm:$0xff]
    %v137 = vld [vmem:[%s129 + $0x38] sm:$0xff]
    %v138 = vld [vmem:[%s129 + $0x40] sm:$0x3]
    %v139 = vld [vmem:[%s129 + $0x48] sm:$0xff]
    %v140 = vld [vmem:[%s129 + $0x50] sm:$0xff]
    %v141 = vld [vmem:[%s129 + $0x58] sm:$0x3]
    %v142 = vld [vmem:[%s129 + $0x60] sm:$0xff]
    %v143 = vld [vmem:[%s129 + $0x68] sm:$0xff]
    %v144 = vld [vmem:[%s129 + $0x70] sm:$0x3]
    %v145 = vld [vmem:[%s129 + $0x78] sm:$0xff]
    %v146 = vld [vmem:[%s129 + $0x80] sm:$0xff]
    %v147 = vld [vmem:[%s129 + $0x88] sm:$0x3]
    %v148 = vld [vmem:[%s129 + $0x90] sm:$0xff]
    %v149 = vld [vmem:[%s129 + $0x98] sm:$0xff]
    %v150 = vld [vmem:[%s129 + $0xa0] sm:$0x3]
    %v151 = vmul.f32 %v130, 0.27406862
    %v152 = vmul.f32 %v131, 0.27406862
    %v153 = vmul.f32 %v132, 0.27406862
    %v154 = vmul.f32 %v133, 0.27406862
    %v155 = vmul.f32 %v134, 0.27406862
    %v156 = vmul.f32 %v135, 0.27406862
    %v157 = vmul.f32 %v136, 0.27406862
    %v158 = vmul.f32 %v137, 0.27406862
    %v159 = vmul.f32 %v138, 0.27406862
    %v160 = vmul.f32 %v139, 0.27406862
    %v161 = vmul.f32 %v140, 0.27406862
    %v162 = vmul.f32 %v141, 0.27406862
    %v163 = vmul.f32 %v142, 0.27406862
    %v164 = vmul.f32 %v143, 0.27406862
    %v165 = vmul.f32 %v144, 0.27406862
    %v166 = vmul.f32 %v145, 0.27406862
    %v167 = vmul.f32 %v146, 0.27406862
    %v168 = vmul.f32 %v147, 0.27406862
    %v169 = vmul.f32 %v148, 0.27406862
    %v170 = vmul.f32 %v149, 0.27406862
    %v171 = vmul.f32 %v150, 0.27406862
    %v172 = vadd.f32 %v108, %v151
    %v173 = vadd.f32 %v109, %v152
    %v174 = vadd.f32 %v110, %v153
    %v175 = vadd.f32 %v111, %v154
    %v176 = vadd.f32 %v112, %v155
    %v177 = vadd.f32 %v113, %v156
    %v178 = vadd.f32 %v114, %v157
    %v179 = vadd.f32 %v115, %v158
    %v180 = vadd.f32 %v116, %v159
    %v181 = vadd.f32 %v117, %v160
    %v182 = vadd.f32 %v118, %v161
    %v183 = vadd.f32 %v119, %v162
    %v184 = vadd.f32 %v120, %v163
    %v185 = vadd.f32 %v121, %v164
    %v186 = vadd.f32 %v122, %v165
    %v187 = vadd.f32 %v123, %v166
    %v188 = vadd.f32 %v124, %v167
    %v189 = vadd.f32 %v125, %v168
    %v190 = vadd.f32 %v126, %v169
    %v191 = vadd.f32 %v127, %v170
    %v192 = vadd.f32 %v128, %v171
    %v193 = vmul.f32 %v172, 0.27406862
    %v194 = vmul.f32 %v173, 0.27406862
    %v195 = vmul.f32 %v175, 0.27406862
    %v196 = vmul.f32 %v176, 0.27406862
    %v197 = vmul.f32 %v178, 0.27406862
    %v198 = vmul.f32 %v179, 0.27406862
    %v199 = vmul.f32 %v181, 0.27406862
    %v200 = vmul.f32 %v182, 0.27406862
    %v201 = vmul.f32 %v184, 0.27406862
    %v202 = vmul.f32 %v185, 0.27406862
    %v203 = vmul.f32 %v187, 0.27406862
    %v204 = vmul.f32 %v188, 0.27406862
    %v205 = vmul.f32 %v190, 0.27406862
    %v206 = vmul.f32 %v191, 0.27406862
    %v207 = vmul.f32 %v172, 0.45186275
    %v208 = vmul.f32 %v173, 0.45186275
    %v209 = vmul.f32 %v174, 0.45186275
    %v210 = vmul.f32 %v175, 0.45186275
    %v211 = vmul.f32 %v176, 0.45186275
    %v212 = vmul.f32 %v177, 0.45186275
    %v213 = vmul.f32 %v178, 0.45186275
    %v214 = vmul.f32 %v179, 0.45186275
    %v215 = vmul.f32 %v180, 0.45186275
    %v216 = vmul.f32 %v181, 0.45186275
    %v217 = vmul.f32 %v182, 0.45186275
    %v218 = vmul.f32 %v183, 0.45186275
    %v219 = vmul.f32 %v184, 0.45186275
    %v220 = vmul.f32 %v185, 0.45186275
    %v221 = vmul.f32 %v186, 0.45186275
    %v222 = vmul.f32 %v187, 0.45186275
    %v223 = vmul.f32 %v188, 0.45186275
    %v224 = vmul.f32 %v189, 0.45186275
    %v225 = vmul.f32 %v190, 0.45186275
    %v226 = vmul.f32 %v191, 0.45186275
    %v227 = vmul.f32 %v192, 0.45186275
    %vm249 = vcmask 1046528
    %v250 = vrot.slane %v207, 1
    %v251 = vrot.slane %v208, 1
    %v252 = vsel %vm249, %v250, %v251
    %v253 = vrot.slane %v209, 1
    %v254 = vsel %vm249, %v251, %v253
    %v255 = vrot.slane %v210, 1
    %v256 = vrot.slane %v211, 1
    %v257 = vsel %vm249, %v255, %v256
    %v258 = vrot.slane %v212, 1
    %v259 = vsel %vm249, %v256, %v258
    %v260 = vrot.slane %v213, 1
    %v261 = vrot.slane %v214, 1
    %v262 = vsel %vm249, %v260, %v261
    %v263 = vrot.slane %v215, 1
    %v264 = vsel %vm249, %v261, %v263
    %v265 = vrot.slane %v216, 1
    %v266 = vrot.slane %v217, 1
    %v267 = vsel %vm249, %v265, %v266
    %v268 = vrot.slane %v218, 1
    %v269 = vsel %vm249, %v266, %v268
    %v270 = vrot.slane %v219, 1
    %v271 = vrot.slane %v220, 1
    %v272 = vsel %vm249, %v270, %v271
    %v273 = vrot.slane %v221, 1
    %v274 = vsel %vm249, %v271, %v273
    %v275 = vrot.slane %v222, 1
    %v276 = vrot.slane %v223, 1
    %v277 = vsel %vm249, %v275, %v276
    %v278 = vrot.slane %v224, 1
    %v279 = vsel %vm249, %v276, %v278
    %v280 = vrot.slane %v225, 1
    %v281 = vrot.slane %v226, 1
    %v282 = vsel %vm249, %v280, %v281
    %v283 = vrot.slane %v227, 1
    %v284 = vsel %vm249, %v281, %v283
    %v299 = vadd.f32 %v193, %v252
    %v300 = vadd.f32 %v194, %v254
    %v301 = vadd.f32 %v195, %v257
    %v302 = vadd.f32 %v196, %v259
    %v303 = vadd.f32 %v197, %v262
    %v304 = vadd.f32 %v198, %v264
    %v305 = vadd.f32 %v199, %v267
    %v306 = vadd.f32 %v200, %v269
    %v307 = vadd.f32 %v201, %v272
    %v308 = vadd.f32 %v202, %v274
    %v309 = vadd.f32 %v203, %v277
    %v310 = vadd.f32 %v204, %v279
    %v311 = vadd.f32 %v205, %v282
    %v312 = vadd.f32 %v206, %v284
    %v313 = vmul.f32 %v174, 0.27406862
    %v314 = vmul.f32 %v177, 0.27406862
    %v315 = vmul.f32 %v180, 0.27406862
    %v316 = vmul.f32 %v183, 0.27406862
    %v317 = vmul.f32 %v186, 0.27406862
    %v318 = vmul.f32 %v189, 0.27406862
    %v319 = vmul.f32 %v192, 0.27406862
    %vm341 = vcmask 1045504
    %v342 = vrot.slane %v193, 2
    %v343 = vrot.slane %v194, 2
    %v344 = vsel %vm341, %v342, %v343
    %v345 = vrot.slane %v313, 2
    %v346 = vsel %vm341, %v343, %v345
    %v347 = vrot.slane %v195, 2
    %v348 = vrot.slane %v196, 2
    %v349 = vsel %vm341, %v347, %v348
    %v350 = vrot.slane %v314, 2
    %v351 = vsel %vm341, %v348, %v350
    %v352 = vrot.slane %v197, 2
    %v353 = vrot.slane %v198, 2
    %v354 = vsel %vm341, %v352, %v353
    %v355 = vrot.slane %v315, 2
    %v356 = vsel %vm341, %v353, %v355
    %v357 = vrot.slane %v199, 2
    %v358 = vrot.slane %v200, 2
    %v359 = vsel %vm341, %v357, %v358
    %v360 = vrot.slane %v316, 2
    %v361 = vsel %vm341, %v358, %v360
    %v362 = vrot.slane %v201, 2
    %v363 = vrot.slane %v202, 2
    %v364 = vsel %vm341, %v362, %v363
    %v365 = vrot.slane %v317, 2
    %v366 = vsel %vm341, %v363, %v365
    %v367 = vrot.slane %v203, 2
    %v368 = vrot.slane %v204, 2
    %v369 = vsel %vm341, %v367, %v368
    %v370 = vrot.slane %v318, 2
    %v371 = vsel %vm341, %v368, %v370
    %v372 = vrot.slane %v205, 2
    %v373 = vrot.slane %v206, 2
    %v374 = vsel %vm341, %v372, %v373
    %v375 = vrot.slane %v319, 2
    %v376 = vsel %vm341, %v373, %v375
    %v391 = vadd.f32 %v299, %v344
    %v392 = vadd.f32 %v300, %v346
    %v393 = vadd.f32 %v301, %v349
    %v394 = vadd.f32 %v302, %v351
    %v395 = vadd.f32 %v303, %v354
    %v396 = vadd.f32 %v304, %v356
    %v397 = vadd.f32 %v305, %v359
    %v398 = vadd.f32 %v306, %v361
    %v399 = vadd.f32 %v307, %v364
    %v400 = vadd.f32 %v308, %v366
    %v401 = vadd.f32 %v309, %v369
    %v402 = vadd.f32 %v310, %v371
    %v403 = vadd.f32 %v311, %v374
    %v404 = vadd.f32 %v312, %v376
    %405 = vst [vmem:[#allocation5] sm:$0xff] %v391
    %406 = vst [vmem:[#allocation5 + $0x8] sm:$0xff] %v392
    %407 = vst [vmem:[#allocation5 + $0x10] sm:$0xff] %v393
    %408 = vst [vmem:[#allocation5 + $0x18] sm:$0xff] %v394
    %409 = vst [vmem:[#allocation5 + $0x20] sm:$0xff] %v395
    %410 = vst [vmem:[#allocation5 + $0x28] sm:$0xff] %v396
    %411 = vst [vmem:[#allocation5 + $0x30] sm:$0xff] %v397
    %412 = vst [vmem:[#allocation5 + $0x38] sm:$0xff] %v398
    %413 = vst [vmem:[#allocation5 + $0x40] sm:$0xff] %v399
    %414 = vst [vmem:[#allocation5 + $0x48] sm:$0xff] %v400
    %415 = vst [vmem:[#allocation5 + $0x50] sm:$0xff] %v401
    %416 = vst [vmem:[#allocation5 + $0x58] sm:$0xff] %v402
    %417 = vst [vmem:[#allocation5 + $0x60] sm:$0xff] %v403
    %418 = vst [vmem:[#allocation5 + $0x68] sm:$0xff] %v404
    %s419 = scalar_lea.vmem [#allocation2], 168
    %v420 = vld [vmem:[%s419] sm:$0xff]
    %v421 = vld [vmem:[%s419 + $0x8] sm:$0xff]
    %v422 = vld [vmem:[%s419 + $0x10] sm:$0x3]
    %v423 = vld [vmem:[%s419 + $0x18] sm:$0xff]
    %v424 = vld [vmem:[%s419 + $0x20] sm:$0xff]
    %v425 = vld [vmem:[%s419 + $0x28] sm:$0x3]
    %v426 = vld [vmem:[%s419 + $0x30] sm:$0xff]
    %v427 = vld [vmem:[%s419 + $0x38] sm:$0xff]
    %v428 = vld [vmem:[%s419 + $0x40] sm:$0x3]
    %v429 = vld [vmem:[%s419 + $0x48] sm:$0xff]
    %v430 = vld [vmem:[%s419 + $0x50] sm:$0xff]
    %v431 = vld [vmem:[%s419 + $0x58] sm:$0x3]
    %v432 = vld [vmem:[%s419 + $0x60] sm:$0xff]
    %v433 = vld [vmem:[%s419 + $0x68] sm:$0xff]
    %v434 = vld [vmem:[%s419 + $0x70] sm:$0x3]
    %v435 = vld [vmem:[%s419 + $0x78] sm:$0xff]
    %v436 = vld [vmem:[%s419 + $0x80] sm:$0xff]
    %v437 = vld [vmem:[%s419 + $0x88] sm:$0x3]
    %v438 = vld [vmem:[%s419 + $0x90] sm:$0xff]
    %v439 = vld [vmem:[%s419 + $0x98] sm:$0xff]
    %v440 = vld [vmem:[%s419 + $0xa0] sm:$0x3]
    %v441 = vmul.f32 %v420, 0.27406862
    %v442 = vmul.f32 %v421, 0.27406862
    %v443 = vmul.f32 %v422, 0.27406862
    %v444 = vmul.f32 %v423, 0.27406862
    %v445 = vmul.f32 %v424, 0.27406862
    %v446 = vmul.f32 %v425, 0.27406862
    %v447 = vmul.f32 %v426, 0.27406862
    %v448 = vmul.f32 %v427, 0.27406862
    %v449 = vmul.f32 %v428, 0.27406862
    %v450 = vmul.f32 %v429, 0.27406862
    %v451 = vmul.f32 %v430, 0.27406862
    %v452 = vmul.f32 %v431, 0.27406862
    %v453 = vmul.f32 %v432, 0.27406862
    %v454 = vmul.f32 %v433, 0.27406862
    %v455 = vmul.f32 %v434, 0.27406862
    %v456 = vmul.f32 %v435, 0.27406862
    %v457 = vmul.f32 %v436, 0.27406862
    %v458 = vmul.f32 %v437, 0.27406862
    %v459 = vmul.f32 %v438, 0.27406862
    %v460 = vmul.f32 %v439, 0.27406862
    %v461 = vmul.f32 %v440, 0.27406862
    %s462 = scalar_lea.vmem [#allocation2], 192
    %v463 = vld [vmem:[%s462] sm:$0xff]
    %v464 = vld [vmem:[%s462 + $0x8] sm:$0xff]
    %v465 = vld [vmem:[%s462 + $0x10] sm:$0x3]
    %v466 = vld [vmem:[%s462 + $0x18] sm:$0xff]
    %v467 = vld [vmem:[%s462 + $0x20] sm:$0xff]
    %v468 = vld [vmem:[%s462 + $0x28] sm:$0x3]
    %v469 = vld [vmem:[%s462 + $0x30] sm:$0xff]
    %v470 = vld [vmem:[%s462 + $0x38] sm:$0xff]
    %v471 = vld [vmem:[%s462 + $0x40] sm:$0x3]
    %v472 = vld [vmem:[%s462 + $0x48] sm:$0xff]
    %v473 = vld [vmem:[%s462 + $0x50] sm:$0xff]
    %v474 = vld [vmem:[%s462 + $0x58] sm:$0x3]
    %v475 = vld [vmem:[%s462 + $0x60] sm:$0xff]
    %v476 = vld [vmem:[%s462 + $0x68] sm:$0xff]
    %v477 = vld [vmem:[%s462 + $0x70] sm:$0x3]
    %v478 = vld [vmem:[%s462 + $0x78] sm:$0xff]
    %v479 = vld [vmem:[%s462 + $0x80] sm:$0xff]
    %v480 = vld [vmem:[%s462 + $0x88] sm:$0x3]
    %v481 = vld [vmem:[%s462 + $0x90] sm:$0xff]
    %v482 = vld [vmem:[%s462 + $0x98] sm:$0xff]
    %v483 = vld [vmem:[%s462 + $0xa0] sm:$0x3]
    %v484 = vmul.f32 %v463, 0.45186275
    %v485 = vmul.f32 %v464, 0.45186275
    %v486 = vmul.f32 %v465, 0.45186275
    %v487 = vmul.f32 %v466, 0.45186275
    %v488 = vmul.f32 %v467, 0.45186275
    %v489 = vmul.f32 %v468, 0.45186275
    %v490 = vmul.f32 %v469, 0.45186275
    %v491 = vmul.f32 %v470, 0.45186275
    %v492 = vmul.f32 %v471, 0.45186275
    %v493 = vmul.f32 %v472, 0.45186275
    %v494 = vmul.f32 %v473, 0.45186275
    %v495 = vmul.f32 %v474, 0.45186275
    %v496 = vmul.f32 %v475, 0.45186275
    %v497 = vmul.f32 %v476, 0.45186275
    %v498 = vmul.f32 %v477, 0.45186275
    %v499 = vmul.f32 %v478, 0.45186275
    %v500 = vmul.f32 %v479, 0.45186275
    %v501 = vmul.f32 %v480, 0.45186275
    %v502 = vmul.f32 %v481, 0.45186275
    %v503 = vmul.f32 %v482, 0.45186275
    %v504 = vmul.f32 %v483, 0.45186275
    %v505 = vadd.f32 %v441, %v484
    %v506 = vadd.f32 %v442, %v485
    %v507 = vadd.f32 %v443, %v486
    %v508 = vadd.f32 %v444, %v487
    %v509 = vadd.f32 %v445, %v488
    %v510 = vadd.f32 %v446, %v489
    %v511 = vadd.f32 %v447, %v490
    %v512 = vadd.f32 %v448, %v491
    %v513 = vadd.f32 %v449, %v492
    %v514 = vadd.f32 %v450, %v493
    %v515 = vadd.f32 %v451, %v494
    %v516 = vadd.f32 %v452, %v495
    %v517 = vadd.f32 %v453, %v496
    %v518 = vadd.f32 %v454, %v497
    %v519 = vadd.f32 %v455, %v498
    %v520 = vadd.f32 %v456, %v499
    %v521 = vadd.f32 %v457, %v500
    %v522 = vadd.f32 %v458, %v501
    %v523 = vadd.f32 %v459, %v502
    %v524 = vadd.f32 %v460, %v503
    %v525 = vadd.f32 %v461, %v504
    %s526 = scalar_lea.vmem [#allocation2], 216
    %v527 = vld [vmem:[%s526] sm:$0xff]
    %v528 = vld [vmem:[%s526 + $0x8] sm:$0xff]
    %v529 = vld [vmem:[%s526 + $0x10] sm:$0x3]
    %v530 = vld [vmem:[%s526 + $0x18] sm:$0xff]
    %v531 = vld [vmem:[%s526 + $0x20] sm:$0xff]
    %v532 = vld [vmem:[%s526 + $0x28] sm:$0x3]
    %v533 = vld [vmem:[%s526 + $0x30] sm:$0xff]
    %v534 = vld [vmem:[%s526 + $0x38] sm:$0xff]
    %v535 = vld [vmem:[%s526 + $0x40] sm:$0x3]
    %v536 = vld [vmem:[%s526 + $0x48] sm:$0xff]
    %v537 = vld [vmem:[%s526 + $0x50] sm:$0xff]
    %v538 = vld [vmem:[%s526 + $0x58] sm:$0x3]
    %v539 = vld [vmem:[%s526 + $0x60] sm:$0xff]
    %v540 = vld [vmem:[%s526 + $0x68] sm:$0xff]
    %v541 = vld [vmem:[%s526 + $0x70] sm:$0x3]
    %v542 = vld [vmem:[%s526 + $0x78] sm:$0xff]
    %v543 = vld [vmem:[%s526 + $0x80] sm:$0xff]
    %v544 = vld [vmem:[%s526 + $0x88] sm:$0x3]
    %v545 = vld [vmem:[%s526 + $0x90] sm:$0xff]
    %v546 = vld [vmem:[%s526 + $0x98] sm:$0xff]
    %v547 = vld [vmem:[%s526 + $0xa0] sm:$0x3]
    %v548 = vmul.f32 %v527, 0.27406862
    %v549 = vmul.f32 %v528, 0.27406862
    %v550 = vmul.f32 %v529, 0.27406862
    %v551 = vmul.f32 %v530, 0.27406862
    %v552 = vmul.f32 %v531, 0.27406862
    %v553 = vmul.f32 %v532, 0.27406862
    %v554 = vmul.f32 %v533, 0.27406862
    %v555 = vmul.f32 %v534, 0.27406862
    %v556 = vmul.f32 %v535, 0.27406862
    %v557 = vmul.f32 %v536, 0.27406862
    %v558 = vmul.f32 %v537, 0.27406862
    %v559 = vmul.f32 %v538, 0.27406862
    %v560 = vmul.f32 %v539, 0.27406862
    %v561 = vmul.f32 %v540, 0.27406862
    %v562 = vmul.f32 %v541, 0.27406862
    %v563 = vmul.f32 %v542, 0.27406862
    %v564 = vmul.f32 %v543, 0.27406862
    %v565 = vmul.f32 %v544, 0.27406862
    %v566 = vmul.f32 %v545, 0.27406862
    %v567 = vmul.f32 %v546, 0.27406862
    %v568 = vmul.f32 %v547, 0.27406862
    %v569 = vadd.f32 %v505, %v548
    %v570 = vadd.f32 %v506, %v549
    %v571 = vadd.f32 %v507, %v550
    %v572 = vadd.f32 %v508, %v551
    %v573 = vadd.f32 %v509, %v552
    %v574 = vadd.f32 %v510, %v553
    %v575 = vadd.f32 %v511, %v554
    %v576 = vadd.f32 %v512, %v555
    %v577 = vadd.f32 %v513, %v556
    %v578 = vadd.f32 %v514, %v557
    %v579 = vadd.f32 %v515, %v558
    %v580 = vadd.f32 %v516, %v559
    %v581 = vadd.f32 %v517, %v560
    %v582 = vadd.f32 %v518, %v561
    %v583 = vadd.f32 %v519, %v562
    %v584 = vadd.f32 %v520, %v563
    %v585 = vadd.f32 %v521, %v564
    %v586 = vadd.f32 %v522, %v565
    %v587 = vadd.f32 %v523, %v566
    %v588 = vadd.f32 %v524, %v567
    %v589 = vadd.f32 %v525, %v568
    %v590 = vmul.f32 %v569, 0.27406862
    %v591 = vmul.f32 %v570, 0.27406862
    %v592 = vmul.f32 %v572, 0.27406862
    %v593 = vmul.f32 %v573, 0.27406862
    %v594 = vmul.f32 %v575, 0.27406862
    %v595 = vmul.f32 %v576, 0.27406862
    %v596 = vmul.f32 %v578, 0.27406862
    %v597 = vmul.f32 %v579, 0.27406862
    %v598 = vmul.f32 %v581, 0.27406862
    %v599 = vmul.f32 %v582, 0.27406862
    %v600 = vmul.f32 %v584, 0.27406862
    %v601 = vmul.f32 %v585, 0.27406862
    %v602 = vmul.f32 %v587, 0.27406862
    %v603 = vmul.f32 %v588, 0.27406862
    %v604 = vmul.f32 %v569, 0.45186275
    %v605 = vmul.f32 %v570, 0.45186275
    %v606 = vmul.f32 %v571, 0.45186275
    %v607 = vmul.f32 %v572, 0.45186275
    %v608 = vmul.f32 %v573, 0.45186275
    %v609 = vmul.f32 %v574, 0.45186275
    %v610 = vmul.f32 %v575, 0.45186275
    %v611 = vmul.f32 %v576, 0.45186275
    %v612 = vmul.f32 %v577, 0.45186275
    %v613 = vmul.f32 %v578, 0.45186275
    %v614 = vmul.f32 %v579, 0.45186275
    %v615 = vmul.f32 %v580, 0.45186275
    %v616 = vmul.f32 %v581, 0.45186275
    %v617 = vmul.f32 %v582, 0.45186275
    %v618 = vmul.f32 %v583, 0.45186275
    %v619 = vmul.f32 %v584, 0.45186275
    %v620 = vmul.f32 %v585, 0.45186275
    %v621 = vmul.f32 %v586, 0.45186275
    %v622 = vmul.f32 %v587, 0.45186275
    %v623 = vmul.f32 %v588, 0.45186275
    %v624 = vmul.f32 %v589, 0.45186275
    %v646 = vrot.slane %v604, 1
    %v647 = vrot.slane %v605, 1
    %v648 = vsel %vm249, %v646, %v647
    %v649 = vrot.slane %v606, 1
    %v650 = vsel %vm249, %v647, %v649
    %v651 = vrot.slane %v607, 1
    %v652 = vrot.slane %v608, 1
    %v653 = vsel %vm249, %v651, %v652
    %v654 = vrot.slane %v609, 1
    %v655 = vsel %vm249, %v652, %v654
    %v656 = vrot.slane %v610, 1
    %v657 = vrot.slane %v611, 1
    %v658 = vsel %vm249, %v656, %v657
    %v659 = vrot.slane %v612, 1
    %v660 = vsel %vm249, %v657, %v659
    %v661 = vrot.slane %v613, 1
    %v662 = vrot.slane %v614, 1
    %v663 = vsel %vm249, %v661, %v662
    %v664 = vrot.slane %v615, 1
    %v665 = vsel %vm249, %v662, %v664
    %v666 = vrot.slane %v616, 1
    %v667 = vrot.slane %v617, 1
    %v668 = vsel %vm249, %v666, %v667
    %v669 = vrot.slane %v618, 1
    %v670 = vsel %vm249, %v667, %v669
    %v671 = vrot.slane %v619, 1
    %v672 = vrot.slane %v620, 1
    %v673 = vsel %vm249, %v671, %v672
    %v674 = vrot.slane %v621, 1
    %v675 = vsel %vm249, %v672, %v674
    %v676 = vrot.slane %v622, 1
    %v677 = vrot.slane %v623, 1
    %v678 = vsel %vm249, %v676, %v677
    %v679 = vrot.slane %v624, 1
    %v680 = vsel %vm249, %v677, %v679
    %v695 = vadd.f32 %v590, %v648
    %v696 = vadd.f32 %v591, %v650
    %v697 = vadd.f32 %v592, %v653
    %v698 = vadd.f32 %v593, %v655
    %v699 = vadd.f32 %v594, %v658
    %v700 = vadd.f32 %v595, %v660
    %v701 = vadd.f32 %v596, %v663
    %v702 = vadd.f32 %v597, %v665
    %v703 = vadd.f32 %v598, %v668
    %v704 = vadd.f32 %v599, %v670
    %v705 = vadd.f32 %v600, %v673
    %v706 = vadd.f32 %v601, %v675
    %v707 = vadd.f32 %v602, %v678
    %v708 = vadd.f32 %v603, %v680
    %v709 = vmul.f32 %v571, 0.27406862
    %v710 = vmul.f32 %v574, 0.27406862
    %v711 = vmul.f32 %v577, 0.27406862
    %v712 = vmul.f32 %v580, 0.27406862
    %v713 = vmul.f32 %v583, 0.27406862
    %v714 = vmul.f32 %v586, 0.27406862
    %v715 = vmul.f32 %v589, 0.27406862
    %v737 = vrot.slane %v590, 2
    %v738 = vrot.slane %v591, 2
    %v739 = vsel %vm341, %v737, %v738
    %v740 = vrot.slane %v709, 2
    %v741 = vsel %vm341, %v738, %v740
    %v742 = vrot.slane %v592, 2
    %v743 = vrot.slane %v593, 2
    %v744 = vsel %vm341, %v742, %v743
    %v745 = vrot.slane %v710, 2
    %v746 = vsel %vm341, %v743, %v745
    %v747 = vrot.slane %v594, 2
    %v748 = vrot.slane %v595, 2
    %v749 = vsel %vm341, %v747, %v748
    %v750 = vrot.slane %v711, 2
    %v751 = vsel %vm341, %v748, %v750
    %v752 = vrot.slane %v596, 2
    %v753 = vrot.slane %v597, 2
    %v754 = vsel %vm341, %v752, %v753
    %v755 = vrot.slane %v712, 2
    %v756 = vsel %vm341, %v753, %v755
    %v757 = vrot.slane %v598, 2
    %v758 = vrot.slane %v599, 2
    %v759 = vsel %vm341, %v757, %v758
    %v760 = vrot.slane %v713, 2
    %v761 = vsel %vm341, %v758, %v760
    %v762 = vrot.slane %v600, 2
    %v763 = vrot.slane %v601, 2
    %v764 = vsel %vm341, %v762, %v763
    %v765 = vrot.slane %v714, 2
    %v766 = vsel %vm341, %v763, %v765
    %v767 = vrot.slane %v602, 2
    %v768 = vrot.slane %v603, 2
    %v769 = vsel %vm341, %v767, %v768
    %v770 = vrot.slane %v715, 2
    %v771 = vsel %vm341, %v768, %v770
    %v786 = vadd.f32 %v695, %v739
    %v787 = vadd.f32 %v696, %v741
    %v788 = vadd.f32 %v697, %v744
    %v789 = vadd.f32 %v698, %v746
    %v790 = vadd.f32 %v699, %v749
    %v791 = vadd.f32 %v700, %v751
    %v792 = vadd.f32 %v701, %v754
    %v793 = vadd.f32 %v702, %v756
    %v794 = vadd.f32 %v703, %v759
    %v795 = vadd.f32 %v704, %v761
    %v796 = vadd.f32 %v705, %v764
    %v797 = vadd.f32 %v706, %v766
    %v798 = vadd.f32 %v707, %v769
    %v799 = vadd.f32 %v708, %v771
    %s800 = scalar_lea.vmem [#allocation5], 112
    %801 = vst [vmem:[%s800] sm:$0xff] %v786
    %802 = vst [vmem:[%s800 + $0x8] sm:$0xff] %v787
    %803 = vst [vmem:[%s800 + $0x10] sm:$0xff] %v788
    %804 = vst [vmem:[%s800 + $0x18] sm:$0xff] %v789
    %805 = vst [vmem:[%s800 + $0x20] sm:$0xff] %v790
    %806 = vst [vmem:[%s800 + $0x28] sm:$0xff] %v791
    %807 = vst [vmem:[%s800 + $0x30] sm:$0xff] %v792
    %808 = vst [vmem:[%s800 + $0x38] sm:$0xff] %v793
    %809 = vst [vmem:[%s800 + $0x40] sm:$0xff] %v794
    %810 = vst [vmem:[%s800 + $0x48] sm:$0xff] %v795
    %811 = vst [vmem:[%s800 + $0x50] sm:$0xff] %v796
    %812 = vst [vmem:[%s800 + $0x58] sm:$0xff] %v797
    %813 = vst [vmem:[%s800 + $0x60] sm:$0xff] %v798
    %814 = vst [vmem:[%s800 + $0x68] sm:$0xff] %v799
    %s815 = scalar_lea.vmem [#allocation2], 336
    %v816 = vld [vmem:[%s815] sm:$0xff]
    %v817 = vld [vmem:[%s815 + $0x8] sm:$0xff]
    %v818 = vld [vmem:[%s815 + $0x10] sm:$0x3]
    %v819 = vld [vmem:[%s815 + $0x18] sm:$0xff]
    %v820 = vld [vmem:[%s815 + $0x20] sm:$0xff]
    %v821 = vld [vmem:[%s815 + $0x28] sm:$0x3]
    %v822 = vmul.f32 %v816, 0.27406862
    %v823 = vmul.f32 %v817, 0.27406862
    %v824 = vmul.f32 %v818, 0.27406862
    %v825 = vmul.f32 %v819, 0.27406862
    %v826 = vmul.f32 %v820, 0.27406862
    %v827 = vmul.f32 %v821, 0.27406862
    %s828 = scalar_lea.vmem [#allocation2], 360
    %v829 = vld [vmem:[%s828] sm:$0xff]
    %v830 = vld [vmem:[%s828 + $0x8] sm:$0xff]
    %v831 = vld [vmem:[%s828 + $0x10] sm:$0x3]
    %v832 = vld [vmem:[%s828 + $0x18] sm:$0xff]
    %v833 = vld [vmem:[%s828 + $0x20] sm:$0xff]
    %v834 = vld [vmem:[%s828 + $0x28] sm:$0x3]
    %v835 = vmul.f32 %v829, 0.45186275
    %v836 = vmul.f32 %v830, 0.45186275
    %v837 = vmul.f32 %v831, 0.45186275
    %v838 = vmul.f32 %v832, 0.45186275
    %v839 = vmul.f32 %v833, 0.45186275
    %v840 = vmul.f32 %v834, 0.45186275
    %v841 = vadd.f32 %v822, %v835
    %v842 = vadd.f32 %v823, %v836
    %v843 = vadd.f32 %v824, %v837
    %v844 = vadd.f32 %v825, %v838
    %v845 = vadd.f32 %v826, %v839
    %v846 = vadd.f32 %v827, %v840
    %s847 = scalar_lea.vmem [#allocation2], 384
    %v848 = vld [vmem:[%s847] sm:$0xff]
    %v849 = vld [vmem:[%s847 + $0x8] sm:$0xff]
    %v850 = vld [vmem:[%s847 + $0x10] sm:$0x3]
    %v851 = vld [vmem:[%s847 + $0x18] sm:$0xff]
    %v852 = vld [vmem:[%s847 + $0x20] sm:$0xff]
    %v853 = vld [vmem:[%s847 + $0x28] sm:$0x3]
    %v854 = vmul.f32 %v848, 0.27406862
    %v855 = vmul.f32 %v849, 0.27406862
    %v856 = vmul.f32 %v850, 0.27406862
    %v857 = vmul.f32 %v851, 0.27406862
    %v858 = vmul.f32 %v852, 0.27406862
    %v859 = vmul.f32 %v853, 0.27406862
    %v860 = vadd.f32 %v841, %v854
    %v861 = vadd.f32 %v842, %v855
    %v862 = vadd.f32 %v843, %v856
    %v863 = vadd.f32 %v844, %v857
    %v864 = vadd.f32 %v845, %v858
    %v865 = vadd.f32 %v846, %v859
    %v866 = vmul.f32 %v860, 0.27406862
    %v867 = vmul.f32 %v861, 0.27406862
    %v868 = vmul.f32 %v863, 0.27406862
    %v869 = vmul.f32 %v864, 0.27406862
    %v870 = vmul.f32 %v860, 0.45186275
    %v871 = vmul.f32 %v861, 0.45186275
    %v872 = vmul.f32 %v862, 0.45186275
    %v873 = vmul.f32 %v863, 0.45186275
    %v874 = vmul.f32 %v864, 0.45186275
    %v875 = vmul.f32 %v865, 0.45186275
    %v882 = vrot.slane %v870, 1
    %v883 = vrot.slane %v871, 1
    %v884 = vsel %vm249, %v882, %v883
    %v885 = vrot.slane %v872, 1
    %v886 = vsel %vm249, %v883, %v885
    %v887 = vrot.slane %v873, 1
    %v888 = vrot.slane %v874, 1
    %v889 = vsel %vm249, %v887, %v888
    %v890 = vrot.slane %v875, 1
    %v891 = vsel %vm249, %v888, %v890
    %v896 = vadd.f32 %v866, %v884
    %v897 = vadd.f32 %v867, %v886
    %v898 = vadd.f32 %v868, %v889
    %v899 = vadd.f32 %v869, %v891
    %v900 = vmul.f32 %v862, 0.27406862
    %v901 = vmul.f32 %v865, 0.27406862
    %v908 = vrot.slane %v866, 2
    %v909 = vrot.slane %v867, 2
    %v910 = vsel %vm341, %v908, %v909
    %v911 = vrot.slane %v900, 2
    %v912 = vsel %vm341, %v909, %v911
    %v913 = vrot.slane %v868, 2
    %v914 = vrot.slane %v869, 2
    %v915 = vsel %vm341, %v913, %v914
    %v916 = vrot.slane %v901, 2
    %v917 = vsel %vm341, %v914, %v916
    %v922 = vadd.f32 %v896, %v910
    %v923 = vadd.f32 %v897, %v912
    %v924 = vadd.f32 %v898, %v915
    %v925 = vadd.f32 %v899, %v917
    %s926 = scalar_lea.vmem [#allocation5], 224
    %927 = vst [vmem:[%s926] sm:$0xff] %v922
    %928 = vst [vmem:[%s926 + $0x8] sm:$0xff] %v923
    %929 = vst [vmem:[%s926 + $0x10] sm:$0xff] %v924
    %930 = vst [vmem:[%s926 + $0x18] sm:$0xff] %v925
    // Predicated region
    $region10: #{tpu_custom_call.1} parent=1 // pred_check
      _
    $region11: #{tpu_custom_call.1} parent=1 // pred_check_branch
      %932 = sbr.rel (0) target = $region13
    $region12: #{tpu_custom_call.1} parent=1 // pred_region
      %s934 = ssub.s32 4096, 4096
      %935 = vsyncadd [#allocation4], %s934
      %s936 = sshll.u32 [#allocation5], 4
      %s937 = int_to_ptr.vmem [resolvable:$true] %s936
      %942 = dma.vmem_to_hbm [thread:$0]  %s937, 4096, %s1, [#allocation4], 128, 128, 8
    $region13: #{tpu_custom_call.1} parent=1 // pred_fallthru
      _
    // Predicated region
    $region14: #{tpu_custom_call.1} parent=1 // pred_check
      _
    $region15: #{tpu_custom_call.1} parent=1 // pred_check_branch
      %944 = sbr.rel (0) target = $region17
    $region16: #{tpu_custom_call.1} parent=1 // pred_region
      %945 = dma.done [#allocation4], 4096
    $region17: #{tpu_custom_call.1} parent=1 // pred_fallthru
      _
    %946 = vsyncpa [#allocation3], 1
    %947 = vsyncpa [#allocation4], 1

</llo_original>
